<compile_context>
chip_gen: v6e
topology: v6e:2x2x1
jax: 0.10.0
libtpu: 0.0.40
codegen_flags: <defaults>
</compile_context>

<pallas_src>
import math

import jax
import jax.numpy as jnp
from jax.experimental import pallas as pl
from jax.experimental.pallas import tpu as pltpu


# ----------------------------- small helpers ------------------------------- #

def _round_up(x, m):
    return (x + m - 1) // m * m


def _largest_tile(total, cap, unit):
    """Largest multiple of `unit` that divides `total` and is <= cap (>= unit)."""
    best = unit
    t = unit
    limit = min(total, max(cap, unit))
    while t <= limit:
        if total % t == 0:
            best = t
        t += unit
    return best


def _vmem_capacity_bytes():
    try:
        return int(pltpu.get_tpu_info().vmem_capacity_bytes)
    except Exception:
        # Conservative fallback (v7x per-TensorCore physical VMEM).
        return 64 * 1024 * 1024


def _choose_tk(K, cap=2048):
    """Pick the K tile. Prefer full-extent (no activation padding)."""
    if K <= cap:
        return K, K                       # TK, Kp (no padding anywhere)
    if K % 128 == 0:
        return _largest_tile(K, cap, 128), K
    # Rare fallback: K > cap and not 128-aligned -> pad K (per-call x pad).
    return cap, _round_up(K, cap)


def _footprint_bytes(TM, TN, TK, x_isz, w_isz, out_isz, use_scratch):
    f = 2 * TM * TK * x_isz          # x tile, double-buffered
    f += 2 * TK * TN * w_isz         # weight tile, double-buffered
    f += 2 * 8 * TN * 4              # bias tile (sublane-padded), double-buffered
    f += 2 * TM * TN * out_isz       # output tile
    if use_scratch:
        f += TM * TN * 4             # f32 accumulator scratch
    return f


def _shrink(TM, TN, sub_m, Np):
    """Return strictly smaller (TM, TN) or None if nothing can shrink."""
    if TM > sub_m:
        new_tm = max(sub_m, (TM // 2 // sub_m) * sub_m)
        if new_tm < TM:
            return new_tm, TN
    if TN > 128:
        new_tn = _largest_tile(Np, TN // 2, 128)
        if new_tn < TN:
            return TM, new_tn
    return None


# ------------------------------- kernels ----------------------------------- #

def _linear_kernel_f32out(x_ref, w_ref, b_ref, o_ref):
    # f32 output: accumulate straight into the VMEM-resident output block.
    k = pl.program_id(2)

    @pl.when(k == 0)
    def _():
        o_ref[...] = jnp.broadcast_to(b_ref[...], o_ref.shape)

    o_ref[...] += jnp.dot(x_ref[...], w_ref[...],
                          preferred_element_type=jnp.float32)


def _linear_kernel_acc(x_ref, w_ref, b_ref, o_ref, acc_ref):
    # Non-f32 output: f32 scratch accumulator, cast + bias at the last K step.
    k = pl.program_id(2)

    @pl.when(k == 0)
    def _():
        acc_ref[...] = jnp.zeros_like(acc_ref)

    acc_ref[...] += jnp.dot(x_ref[...], w_ref[...],
                            preferred_element_type=jnp.float32)

    @pl.when(k == pl.num_programs(2) - 1)
    def _():
        o_ref[...] = (acc_ref[...] + b_ref[...]).astype(o_ref.dtype)


# ----------------------------- param handling ------------------------------ #

def init_linear_norm_params(key, in_dim, out_dim, w_init_gain="linear",
                            dtype=jnp.float32):
    """Matches LinearNorm.__init__: xavier_uniform_ weight (gain('linear')=1.0),
    PyTorch default bias init U(-1/sqrt(in_dim), 1/sqrt(in_dim))."""
    gain = 1.0
    wkey, bkey = jax.random.split(key)
    bound_w = gain * (6.0 / (in_dim + out_dim)) ** 0.5
    weight = jax.random.uniform(wkey, (out_dim, in_dim), dtype,
                                minval=-bound_w, maxval=bound_w)
    bound_b = 1.0 / (in_dim ** 0.5)
    bias = jax.random.uniform(bkey, (out_dim,), dtype,
                              minval=-bound_b, maxval=bound_b)
    return weight, bias


def prepare_linear_norm_params(weight, bias=None, *, compute_dtype=None):
    """One-time layout prep (amortized across calls).

    weight: [out_dim, in_dim] (PyTorch layout)  -> stored as [Kp, Np]
    bias:   [out_dim] or None                   -> stored as f32 [1, Np]
    compute_dtype: optional (e.g. jnp.bfloat16) opt-in fast path for v6e/v7x.
    """
    out_dim, in_dim = weight.shape
    if compute_dtype is not None:
        weight = weight.astype(compute_dtype)

    TK, Kp = _choose_tk(in_dim)
    Np = _round_up(out_dim, 128)

    w_kn = weight.T                                   # [in_dim, out_dim]
    if Kp != in_dim or Np != out_dim:
        w_kn = jnp.pad(w_kn, ((0, Kp - in_dim), (0, Np - out_dim)))

    if bias is None:
        bias = jnp.zeros((out_dim,), dtype=jnp.float32)
    b_row = bias.astype(jnp.float32)
    if Np != out_dim:
        b_row = jnp.pad(b_row, (0, Np - out_dim))
    b_row = b_row.reshape(1, Np)

    return {"w_kn": w_kn, "b_row": b_row,
            "in_dim": in_dim, "out_dim": out_dim, "tk": TK}


# -------------------------------- forward ----------------------------------- #

def linear_norm_forward(x, params):
    """y = x @ weight.T + bias  (torch.nn.Linear semantics)."""
    w_kn = params["w_kn"]          # [Kp, Np]
    b_row = params["b_row"]        # [1, Np] f32
    in_dim = params["in_dim"]
    out_dim = params["out_dim"]
    TK = params["tk"]
    Kp, Np = w_kn.shape

    assert x.shape[-1] == in_dim, "last dim of x must equal in_dim"
    lead = x.shape[:-1]
    M = math.prod(lead) if lead else 1
    out_dtype = x.dtype
    compute_dtype = w_kn.dtype
    if x.dtype != compute_dtype:
        x = x.astype(compute_dtype)

    x_isz = jnp.dtype(compute_dtype).itemsize
    w_isz = x_isz
    out_isz = jnp.dtype(out_dtype).itemsize
    # Dtype-aware sublane rounding: 8 for f32, 16 for bf16, 32 for 8-bit.
    sub_m = max(32 // x_isz, 32 // out_isz)
    use_scratch = jnp.dtype(out_dtype) != jnp.dtype(jnp.float32)

    capacity = _vmem_capacity_bytes()
    budget = int(capacity * 0.45)          # ~28 MiB on v7x, ~57 MiB on v5e/v6e
    vmem_limit = int(capacity * 0.70)

    # --- pick (TM, TN) under the per-generation VMEM budget ---
    m_full = _round_up(max(M, 1), sub_m)
    TM = m_full if m_full <= 1024 else 1024   # small-M: whole panel VMEM-resident
    TN = _largest_tile(Np, 512, 128)
    while _footprint_bytes(TM, TN, TK, x_isz, w_isz, out_isz, use_scratch) > budget:
        s = _shrink(TM, TN, sub_m, Np)
        if s is None:
            break
        TM, TN = s

    Mp = _round_up(max(M, 1), TM)

    # v7x megacore: guarantee >=2 blocks across the parallel axes when possible.
    if (Mp // TM) * (Np // TN) == 1 and Np >= 256:
        tn2 = _largest_tile(Np, Np // 2, 128)
        if tn2 < TN:
            TN = tn2

    grid = (Mp // TM, Np // TN, Kp // TK)

    x2d = x.reshape(M, in_dim)
    pad_m = Mp - M
    pad_k = Kp - in_dim                     # non-zero only in rare K fallback
    if pad_m or pad_k:
        x2d = jnp.pad(x2d, ((0, pad_m), (0, pad_k)))

    # Truthful HBM-traffic estimate: x re-read per N block, w re-read per M block.
    cost = pl.CostEstimate(
        flops=2 * Mp * Np * Kp,
        transcendentals=0,
        bytes_accessed=(x2d.size * x_isz * grid[1]
                        + w_kn.size * w_isz * grid[0]
                        + b_row.size * b_row.dtype.itemsize * grid[0]
                        + Mp * Np * out_isz),
    )

    kernel = _linear_kernel_acc if use_scratch else _linear_kernel_f32out
    scratch = [pltpu.VMEM((TM, TN), jnp.float32)] if use_scratch else []

    out2d = pl.pallas_call(
        kernel,
        out_shape=jax.ShapeDtypeStruct((Mp, Np), out_dtype),
        grid_spec=pltpu.PrefetchScalarGridSpec(
            num_scalar_prefetch=0,
            grid=grid,
            in_specs=[
                pl.BlockSpec((TM, TK), lambda i, j, k: (i, k)),   # x tile (M,K)
                pl.BlockSpec((TK, TN), lambda i, j, k: (k, j)),   # w tile (K,N)
                pl.BlockSpec((1, TN), lambda i, j, k: (0, j)),    # bias tile
            ],
            out_specs=pl.BlockSpec((TM, TN), lambda i, j, k: (i, j)),
            scratch_shapes=scratch,
        ),
        compiler_params=pltpu.CompilerParams(
            dimension_semantics=("parallel", "parallel", "arbitrary"),
            vmem_limit_bytes=vmem_limit,
        ),
        cost_estimate=cost,
    )(x2d, w_kn, b_row)

    return out2d[:M, :out_dim].reshape(*lead, out_dim)


# --------------------------------- demo ------------------------------------- #

if __name__ == "__main__":
    key = jax.random.PRNGKey(0)
    kx, kp = jax.random.split(key)

    batch, seq, in_dim, out_dim = 2, 8, 32, 64
    x = jax.random.normal(kx, (batch, seq, in_dim), dtype=jnp.float32)
    weight, bias = init_linear_norm_params(kp, in_dim, out_dim)

    # One-time layout prep (pre-transposed + lane-padded weight), then forward.
    params = prepare_linear_norm_params(weight, bias)
    y = linear_norm_forward(x, params)
    y = jax.block_until_ready(y)

    # Reference check against plain JAX linear (torch.nn.Linear semantics).
    y_ref = x @ weight.T + bias
    assert y.shape == (batch, seq, out_dim)
    assert jnp.allclose(y, y_ref, atol=1e-5, rtol=1e-5)

    print("KERNEL_OK")
</pallas_src>

<mosaic_0001>
module attributes {stable_mosaic.version = 11 : i64} {
  func.func @_linear_kernel_f32out(%arg0: i32, %arg1: i32, %arg2: i32, %arg3: memref<16x32xf32, #tpu.memory_space<vmem>>, %arg4: memref<32x128xf32, #tpu.memory_space<vmem>>, %arg5: memref<1x128xf32, #tpu.memory_space<vmem>>, %arg6: memref<16x128xf32, #tpu.memory_space<vmem>>) attributes {dimension_semantics = [#tpu.dimension_semantics<parallel>, #tpu.dimension_semantics<parallel>, #tpu.dimension_semantics<arbitrary>], iteration_bounds = array<i64: 1, 1, 1>, scalar_prefetch = 0 : i64, scratch_operands = 0 : i64, tpu.core_type = #tpu.core_type<tc>, window_params = [{transform_indices = @transform_0, window_bounds = array<i64: 16, 32>}, {transform_indices = @transform_1, window_bounds = array<i64: 32, 128>}, {transform_indices = @transform_2, window_bounds = array<i64: 1, 128>}, {transform_indices = @transform_3, window_bounds = array<i64: 16, 128>}]} {
    %c0_i32 = arith.constant 0 : i32
    %0 = arith.cmpi eq, %arg2, %c0_i32 : i32
    %1 = arith.extui %0 : i1 to i32
    %c0_i32_0 = arith.constant 0 : i32
    %2 = arith.cmpi ne, %1, %c0_i32_0 : i32
    scf.if %2 {
      %c0_8 = arith.constant 0 : index
      %c0_9 = arith.constant 0 : index
      %9 = vector.load %arg5[%c0_8, %c0_9] : memref<1x128xf32, #tpu.memory_space<vmem>>, vector<1x128xf32>
      %10 = vector.shape_cast %9 : vector<1x128xf32> to vector<1x128xf32>
      %11 = vector.broadcast %10 : vector<1x128xf32> to vector<16x128xf32>
      %c0_10 = arith.constant 0 : index
      %c0_11 = arith.constant 0 : index
      %12 = vector.load %arg6[%c0_10, %c0_11] : memref<16x128xf32, #tpu.memory_space<vmem>>, vector<16x128xf32>
      tpu.vector_store %arg6[%c0_10, %c0_11], %11 {strides = array<i32>} : memref<16x128xf32, #tpu.memory_space<vmem>>, vector<16x128xf32>,
    } else {
    }
    %c0 = arith.constant 0 : index
    %c0_1 = arith.constant 0 : index
    %3 = vector.load %arg6[%c0, %c0_1] : memref<16x128xf32, #tpu.memory_space<vmem>>, vector<16x128xf32>
    %c0_2 = arith.constant 0 : index
    %c0_3 = arith.constant 0 : index
    %4 = vector.load %arg3[%c0_2, %c0_3] : memref<16x32xf32, #tpu.memory_space<vmem>>, vector<16x32xf32>
    %c0_4 = arith.constant 0 : index
    %c0_5 = arith.constant 0 : index
    %5 = vector.load %arg4[%c0_4, %c0_5] : memref<32x128xf32, #tpu.memory_space<vmem>>, vector<32x128xf32>
    %cst = arith.constant dense<0.000000e+00> : vector<16x128xf32>
    %6 = tpu.matmul %4, %5, %cst {dimension_numbers = #tpu.dot_dimension_numbers<[1], [0], [0], [1], [0, 0, 1, 1], [], []>} : vector<16x32xf32>, vector<32x128xf32>, vector<16x128xf32> -> vector<16x128xf32>
    %7 = arith.addf %3, %6 : vector<16x128xf32>
    %c0_6 = arith.constant 0 : index
    %c0_7 = arith.constant 0 : index
    %8 = vector.load %arg6[%c0_6, %c0_7] : memref<16x128xf32, #tpu.memory_space<vmem>>, vector<16x128xf32>
    tpu.vector_store %arg6[%c0_6, %c0_7], %7 {strides = array<i32>} : memref<16x128xf32, #tpu.memory_space<vmem>>, vector<16x128xf32>,
    return
  }
  func.func @transform_0(%arg0: i32, %arg1: i32, %arg2: i32) -> (i32, i32) {
    %c0_i32 = arith.constant 0 : i32
    return %arg0, %arg2 : i32, i32
  }
  func.func @transform_1(%arg0: i32, %arg1: i32, %arg2: i32) -> (i32, i32) {
    %c0_i32 = arith.constant 0 : i32
    return %arg2, %arg1 : i32, i32
  }
  func.func @transform_2(%arg0: i32, %arg1: i32, %arg2: i32) -> (i32, i32) {
    %c0_i32 = arith.constant 0 : i32
    %c0_i32_0 = arith.constant 0 : i32
    return %c0_i32, %arg1 : i32, i32
  }
  func.func @transform_3(%arg0: i32, %arg1: i32, %arg2: i32) -> (i32, i32) {
    %c0_i32 = arith.constant 0 : i32
    return %arg0, %arg1 : i32, i32
  }
}

</mosaic_0001>

<llo_original>
// kernel: tpu_custom_call.1
$region0: #{tpu_custom_call.1}
  #allocation0 [shape = 'u32[]', space=smem, size = 0x4, offset = 0x4, fixed_abs, tag = 'smem constant byte address 0x4 - core index']
  #allocation1 [shape = 'u32[144,128]{1,0:T(1,128)}', space=vmem, size = 0x12000, scoped, tag = 'internal scratch']
  %s0 = inlined_call_operand.hbm [shape: f32[16,32], index: 0, kind: input, shape index: {}]
  %s1 = inlined_call_operand.hbm [shape: f32[32,128], index: 1, kind: input, shape index: {}]
  %s2 = inlined_call_operand.vmem [shape: f32[1,128], index: 2, kind: input, shape index: {}]
  %s3 = inlined_call_operand.hbm [shape: f32[16,128], index: 3, kind: output, shape index: {}]
  %s4 = sld [smem:[#allocation0]]
  $region34: #{tpu_custom_call.1} parent=0
    _
  %s6 = ssub.s32 1, %s4
  %s7 = scalar_select 0, %s6, %s4
  $region1: #{tpu_custom_call.1} parent=0
    #allocation2 [shape = 'u8[8192]{0}', space=vmem, size = 0x2000, scoped, tag = 'input window, operand 0, single buffered']
    #allocation3 [shape = 's32[1]{0}', space=sflag, size = 0x4, scoped, tag = 'scoped memory for tpu_custom_call.1']
    #allocation4 [shape = 's32[1]{0}', space=sflag, size = 0x4, scoped, tag = 'scoped memory for tpu_custom_call.1']
    #allocation5 [shape = 'u8[16384]{0}', space=vmem, size = 0x4000, scoped, tag = 'input window, operand 1, single buffered']
    #allocation6 [shape = 's32[1]{0}', space=sflag, size = 0x4, scoped, tag = 'scoped memory for tpu_custom_call.1']
    #allocation7 [shape = 'u8[8192]{0}', space=vmem, size = 0x2000, scoped, tag = 'output window, operand 0, single buffered']
    %8 = vsyncpa [#allocation3], 0
    %9 = vsyncpa [#allocation6], 0
    %10 = vsyncpa [#allocation4], 0
    // Predicated region
    $region2: #{tpu_custom_call.1} parent=1 // pred_check
      _
    $region3: #{tpu_custom_call.1} parent=1 // pred_check_branch
      %12 = sbr.rel (0) target = $region5
    $region4: #{tpu_custom_call.1} parent=1 // pred_region
      %s14 = ssub.s32 256, 256
      %15 = vsyncadd [#allocation3], %s14
      %s16 = sshll.u32 [#allocation2], 4
      %s17 = int_to_ptr.vmem [resolvable:$true] %s16
      %22 = dma.hbm_to_vmem [thread:$0]  %s0, 256, %s17, [#allocation3], 128, 128, 8
    $region5: #{tpu_custom_call.1} parent=1 // pred_fallthru
      _
    // Predicated region
    $region6: #{tpu_custom_call.1} parent=1 // pred_check
      _
    $region7: #{tpu_custom_call.1} parent=1 // pred_check_branch
      %24 = sbr.rel (0) target = $region9
    $region8: #{tpu_custom_call.1} parent=1 // pred_region
      %s26 = ssub.s32 512, 512
      %27 = vsyncadd [#allocation6], %s26
      %s28 = sshll.u32 [#allocation5], 4
      %s29 = int_to_ptr.vmem [resolvable:$true] %s28
      %34 = dma.hbm_to_vmem [thread:$0]  %s1, 512, %s29, [#allocation6], 128, 128, 8
    $region9: #{tpu_custom_call.1} parent=1 // pred_fallthru
      _
    // Predicated region
    $region10: #{tpu_custom_call.1} parent=1 // pred_check
      _
    $region11: #{tpu_custom_call.1} parent=1 // pred_check_branch
      %36 = sbr.rel (0) target = $region13
    $region12: #{tpu_custom_call.1} parent=1 // pred_region
      _
    $region13: #{tpu_custom_call.1} parent=1 // pred_fallthru
      _
    // Predicated region
    $region14: #{tpu_custom_call.1} parent=1 // pred_check
      _
    $region15: #{tpu_custom_call.1} parent=1 // pred_check_branch
      %38 = sbr.rel (0) target = $region17
    $region16: #{tpu_custom_call.1} parent=1 // pred_region
      %39 = dma.done [#allocation3], 256
    $region17: #{tpu_custom_call.1} parent=1 // pred_fallthru
      _
    // Predicated region
    $region18: #{tpu_custom_call.1} parent=1 // pred_check
      _
    $region19: #{tpu_custom_call.1} parent=1 // pred_check_branch
      %41 = sbr.rel (0) target = $region21
    $region20: #{tpu_custom_call.1} parent=1 // pred_region
      %42 = dma.done [#allocation6], 512
    $region21: #{tpu_custom_call.1} parent=1 // pred_fallthru
      _
    %p43 = scmp.eq.s32.totalorder 0, 0
    // Predicated region
    $region22: #{tpu_custom_call.1} parent=1 // pred_check
      %p44 = pneg %p43
    $region23: #{tpu_custom_call.1} parent=1 // pred_check_branch
      %46 = sbr.rel (%p44) target = $region25
    $region24: #{tpu_custom_call.1} parent=1 // pred_region
      %v47 = vld [vmem:[%s2] sm:$0x1]
      %v49 = vlaneseq
      %v50 = vshrl.u32 %v49, 7
      %v51 = vsub.s32 0, %v50
      %v52 = vrot.slane %v47, %v51
      %54 = vst [vmem:[#allocation7] sm:$0xff] %v52
      %55 = vst [vmem:[#allocation7 + $0x8] sm:$0xff] %v52
    $region25: #{tpu_custom_call.1} parent=1 // pred_fallthru
      _
    %v56 = vld [vmem:[#allocation7] sm:$0xff]
    %v57 = vld [vmem:[#allocation7 + $0x8] sm:$0xff]
    %v58 = vld [vmem:[#allocation2] sm:$0xff]
    %v59 = vld [vmem:[#allocation2 + $0x8] sm:$0xff]
    %v60 = vld [vmem:[#allocation5] sm:$0xff]
    %v61 = vld [vmem:[#allocation5 + $0x8] sm:$0xff]
    %v62 = vld [vmem:[#allocation5 + $0x10] sm:$0xff]
    %v63 = vld [vmem:[#allocation5 + $0x18] sm:$0xff]
    %vm64 = vcmask 261120
    %v66 = vsel %vm64, %v58, 0
    %v69 = vsel %vm64, %v59, 0
    %71 = vmatprep.subr.mxu0 0.0
    %72 = vmatpush1.msra.mxu0 0.0
    %73 = vmatprep.subr.mxu0 0.0
    %74 = vmatpush1.msra.mxu0 0.0
    %75 = vmatprep.subr.mxu0 0.0
    %76 = vmatpush1.msra.mxu0 0.0
    %77 = vmatprep.subr.mxu0 0.0
    %78 = vmatpush1.msra.mxu0 0.0
    %79 = vmatprep.subr.mxu0 0.0
    %80 = vmatpush1.msra.mxu0 0.0
    %81 = vmatprep.subr.mxu0 0.0
    %82 = vmatpush1.msra.mxu0 0.0
    %83 = vmatprep.subr.mxu0 0.0
    %84 = vmatpush1.msra.mxu0 0.0
    %85 = vmatprep.subr.mxu0 0.0
    %86 = vmatpush1.msra.mxu0 0.0
    %87 = vmatprep.subr.mxu0 0.0
    %88 = vmatpush1.msra.mxu0 0.0
    %89 = vmatprep.subr.mxu0 0.0
    %90 = vmatpush1.msra.mxu0 0.0
    %91 = vmatprep.subr.mxu0 0.0
    %92 = vmatpush1.msra.mxu0 0.0
    %93 = vmatprep.subr.mxu0 0.0
    %94 = vmatpush1.msra.mxu0 0.0
    %95 = vmatprep.subr.mxu0 0.0
    %96 = vmatpush1.msra.mxu0 %v63
    %97 = vmatprep.subr.mxu0 0.0
    %98 = vmatpush1.msra.mxu0 %v62
    %99 = vmatprep.subr.mxu0 0.0
    %100 = vmatpush1.msra.mxu0 %v61
    %101 = vmatprep.subr.mxu0 0.0
    %102 = vmatpush1.msra.mxu0 %v60
    %103 = vmatprep.subr.mxu0 0.0
    %104 = vmatpush2.msra.mxu0 0.0
    %105 = vmatprep.subr.mxu0 0.0
    %106 = vmatpush2.msra.mxu0 0.0
    %107 = vmatprep.subr.mxu0 0.0
    %108 = vmatpush2.msra.mxu0 0.0
    %109 = vmatprep.subr.mxu0 0.0
    %110 = vmatpush2.msra.mxu0 0.0
    %111 = vmatprep.subr.mxu0 0.0
    %112 = vmatpush2.msra.mxu0 0.0
    %113 = vmatprep.subr.mxu0 0.0
    %114 = vmatpush2.msra.mxu0 0.0
    %115 = vmatprep.subr.mxu0 0.0
    %116 = vmatpush2.msra.mxu0 0.0
    %117 = vmatprep.subr.mxu0 0.0
    %118 = vmatpush2.msra.mxu0 0.0
    %119 = vmatprep.subr.mxu0 0.0
    %120 = vmatpush2.msra.mxu0 0.0
    %121 = vmatprep.subr.mxu0 0.0
    %122 = vmatpush2.msra.mxu0 0.0
    %123 = vmatprep.subr.mxu0 0.0
    %124 = vmatpush2.msra.mxu0 0.0
    %125 = vmatprep.subr.mxu0 0.0
    %126 = vmatpush2.msra.mxu0 0.0
    %127 = vmatprep.subr.mxu0 0.0
    %128 = vmatpush2.msra.mxu0 0.0
    %129 = vmatprep.subr.mxu0 0.0
    %130 = vmatpush2.msra.mxu0 0.0
    %131 = vmatprep.subr.mxu0 0.0
    %132 = vmatpush2.msra.mxu0 0.0
    %133 = vmatprep.subr.mxu0 0.0
    %134 = vmatpush2.msra.mxu0 0.0
    %135 = vmatprep.mubr.f32.mxu0 0.0
    %136 = vmatmul.mubr.f32.gmra.mxu0 %v66
    %v137 = vpop.f32.mrf.mxu0
    %v138 = vadd.f32 0.0, %v137
    %v139 = vpop.f32.mrf.mxu0
    %140 = vmatprep.mubr.f32.mxu0 0.0
    %141 = vmatmul.mubr.f32.gmra.mxu0 %v69
    %v142 = vpop.f32.mrf.mxu0
    %v143 = vadd.f32 0.0, %v142
    %v144 = vpop.f32.mrf.mxu0
    %145 = vdwg.mxu0
    %v146 = vadd.f32 %v56, %v138
    %v147 = vadd.f32 %v57, %v143
    %148 = vst [vmem:[#allocation7] sm:$0xff] %v146
    %149 = vst [vmem:[#allocation7 + $0x8] sm:$0xff] %v147
    // Predicated region
    $region26: #{tpu_custom_call.1} parent=1 // pred_check
      _
    $region27: #{tpu_custom_call.1} parent=1 // pred_check_branch
      %151 = sbr.rel (0) target = $region29
    $region28: #{tpu_custom_call.1} parent=1 // pred_region
      %s153 = ssub.s32 256, 256
      %154 = vsyncadd [#allocation4], %s153
      %s155 = sshll.u32 [#allocation7], 4
      %s156 = int_to_ptr.vmem [resolvable:$true] %s155
      %161 = dma.vmem_to_hbm [thread:$0]  %s156, 256, %s3, [#allocation4], 128, 128, 8
    $region29: #{tpu_custom_call.1} parent=1 // pred_fallthru
      _
    // Predicated region
    $region30: #{tpu_custom_call.1} parent=1 // pred_check
      _
    $region31: #{tpu_custom_call.1} parent=1 // pred_check_branch
      %163 = sbr.rel (0) target = $region33
    $region32: #{tpu_custom_call.1} parent=1 // pred_region
      %164 = dma.done [#allocation4], 256
    $region33: #{tpu_custom_call.1} parent=1 // pred_fallthru
      _
    %165 = vsyncpa [#allocation3], 1
    %166 = vsyncpa [#allocation6], 1
    %167 = vsyncpa [#allocation4], 1

</llo_original>
